<compile_context>
chip_gen: v7x
topology: tpu7x:2x2x1
jax: 0.10.0
libtpu: 0.0.40
codegen_flags: <defaults>
</compile_context>

<pallas_src>
import jax
import jax.numpy as jnp
from jax.experimental import pallas as pl
from jax.experimental.pallas import tpu as pltpu

_LANE = 128
_SUBLANE = 8


def _round_up(a, b):
    return (a + b - 1) // b * b


def _autopool_kernel(x_ref, alpha_ref, sl_ref, o_ref, m_ref, num_ref, den_ref):
    """Online-softmax AutoPool over one (TR, TT) row/time tile.

    x_ref     : VMEM (TR, TT)  input slab (any float dtype; cast to f32)
    alpha_ref : VMEM (TR, 1)   per-row alpha (f32)
    sl_ref    : VMEM (TR, 1)   per-row sequence length (int32)
    o_ref     : VMEM (TR, 1)   output, written at the last time tile
    m/num/den : VMEM (TR, 1) f32 scratch -- running max, running sum(e*x),
                running sum(e).
    """
    t = pl.program_id(1)
    nt = pl.num_programs(1)
    tt = x_ref.shape[1]

    @pl.when(t == 0)
    def _():
        m_ref[...] = jnp.full_like(m_ref, -jnp.inf)
        num_ref[...] = jnp.zeros_like(num_ref)
        den_ref[...] = jnp.zeros_like(den_ref)

    x = x_ref[...].astype(jnp.float32)        # (TR, TT)
    alpha = alpha_ref[...]                    # (TR, 1)
    sl = sl_ref[...]                          # (TR, 1) int32

    # Global time index of each lane in this tile; frames >= seq_len -> -inf.
    t_idx = jax.lax.broadcasted_iota(jnp.int32, x.shape, 1) + t * tt
    valid = t_idx < sl
    logits = jnp.where(valid, alpha * x, jnp.float32(-jnp.inf))

    # Online softmax update.
    m_prev = m_ref[...]
    m_new = jnp.maximum(m_prev, jnp.max(logits, axis=-1, keepdims=True))
    scale = jnp.exp(m_prev - m_new)           # (TR, 1) rescale of old partials
    e = jnp.exp(logits - m_new)               # (TR, TT); masked frames -> 0

    den_ref[...] = scale * den_ref[...] + jnp.sum(e, axis=-1, keepdims=True)
    num_ref[...] = scale * num_ref[...] + jnp.sum(e * x, axis=-1, keepdims=True)
    m_ref[...] = m_new

    @pl.when(t == nt - 1)
    def _():
        # Fused normalization: out = num / den (no `weights` slab).
        o_ref[...] = num_ref[...] * pl.reciprocal(den_ref[...], approx=False)


def autopool(x, alpha=1.0, seq_len=None, *, time_tile=1024, max_row_tile=1024):
    """AutoPool forward.

    x        : (B, C, T) float32 / bfloat16
    alpha    : scalar, (C,) or (C, 1) -- covers both the scalar and the
               trainable nn.Parameter cases of the PyTorch module
    seq_len  : optional length-B integer sequence lengths
    returns  : (B, C) float32
    """
    x = jnp.asarray(x)
    B, C, T = x.shape
    R = B * C

    # ---- per-row (b, c) parameters --------------------------------------
    alpha_vec = jnp.broadcast_to(jnp.asarray(alpha, jnp.float32).reshape(-1), (C,))
    alpha_rows = jnp.tile(alpha_vec, B)                        # (R,)

    if seq_len is None:
        sl_b = jnp.full((B,), T, dtype=jnp.int32)
    else:
        sl_b = jnp.asarray(seq_len, dtype=jnp.int32)
    sl_rows = jnp.repeat(sl_b, C)                              # (R,)

    # ---- tiling ----------------------------------------------------------
    time_tile = max(_LANE, time_tile // _LANE * _LANE)
    max_row_tile = max(_SUBLANE, max_row_tile // _SUBLANE * _SUBLANE)

    T_pad = _round_up(T, _LANE)
    if T_pad <= time_tile:
        TT = T_pad                                 # single time tile
    else:
        TT = time_tile
        T_pad = _round_up(T, TT)

    # Keep one x block around ~2 MiB of f32 (Pallas double-buffers it), so the
    # whole working set stays well under even v5e's 16 MiB scoped default.
    budget_elems = 512 * 1024
    max_tr_budget = max(_SUBLANE, (budget_elems // TT) // _SUBLANE * _SUBLANE)
    TR = min(max_row_tile, max_tr_budget, _round_up(R, _SUBLANE))
    R_pad = _round_up(R, TR)

    # ---- pad to tile multiples (padded rows / frames are masked out) -----
    xr = x.reshape(R, T)
    if R_pad != R or T_pad != T:
        xr = jnp.pad(xr, ((0, R_pad - R), (0, T_pad - T)))
    if R_pad != R:
        alpha_rows = jnp.pad(alpha_rows, (0, R_pad - R))
        sl_rows = jnp.pad(sl_rows, (0, R_pad - R), constant_values=T_pad)
    alpha_rows = alpha_rows[:, None].astype(jnp.float32)       # (R_pad, 1)
    sl_rows = sl_rows[:, None].astype(jnp.int32)               # (R_pad, 1)

    grid = (R_pad // TR, T_pad // TT)
    grid_spec = pltpu.PrefetchScalarGridSpec(
        num_scalar_prefetch=0,
        grid=grid,
        in_specs=[
            pl.BlockSpec((TR, TT), lambda r, t: (r, t)),   # x
            pl.BlockSpec((TR, 1), lambda r, t: (r, 0)),    # alpha per row
            pl.BlockSpec((TR, 1), lambda r, t: (r, 0)),    # seq_len per row
        ],
        out_specs=pl.BlockSpec((TR, 1), lambda r, t: (r, 0)),
        scratch_shapes=[
            pltpu.VMEM((TR, 1), jnp.float32),   # running max
            pltpu.VMEM((TR, 1), jnp.float32),   # running numerator
            pltpu.VMEM((TR, 1), jnp.float32),   # running denominator
        ],
    )

    out = pl.pallas_call(
        _autopool_kernel,
        out_shape=jax.ShapeDtypeStruct((R_pad, 1), jnp.float32),
        grid_spec=grid_spec,
        compiler_params=pltpu.CompilerParams(
            # Rows are independent (megacore-shardable on v7x); time is the
            # reduction axis and must stay "arbitrary".
            dimension_semantics=("parallel", "arbitrary"),
            vmem_limit_bytes=32 * 1024 * 1024,
        ),
    )(xr, alpha_rows, sl_rows)

    return out[:R, 0].reshape(B, C)


def _autopool_ref(x, alpha, seq_len=None):
    """Pure-JAX reference mirroring the PyTorch module exactly."""
    alpha = jnp.asarray(alpha, x.dtype)
    if alpha.ndim == 2:              # (C, 1) trainable parameter
        alpha = alpha[None]          # (1, C, 1)
    x_ = alpha * x
    if seq_len is not None:
        sl = jnp.asarray(seq_len, x.dtype)[:, None, None]
        mask = (jnp.cumsum(jnp.ones_like(x_), axis=-1) <= sl).astype(x.dtype)
        x_ = x_ * mask + jnp.log(mask)
    weights = jax.nn.softmax(x_, axis=-1)
    return jnp.sum(weights * x, axis=-1)


if __name__ == "__main__":
    # Shapes consistent with the module docstring: x (4, 10, 17), per-batch seq_len.
    B, C, T = 4, 10, 17
    key = jax.random.PRNGKey(0)
    k1, k2, k3 = jax.random.split(key, 3)
    x = jax.random.normal(k1, (B, C, T), dtype=jnp.float32)
    seq_len = [17, 15, 12, 9]

    # Trainable-style (n_classes, 1) alpha parameter.
    alpha = 1.0 + 0.1 * jax.random.normal(k2, (C, 1), dtype=jnp.float32)

    out = jax.block_until_ready(autopool(x, alpha, seq_len=seq_len))
    ref = _autopool_ref(x, alpha, seq_len=seq_len)
    assert out.shape == (B, C), out.shape
    assert jnp.allclose(out, ref, atol=1e-5, rtol=1e-5), (out, ref)

    # Scalar (non-trainable) alpha and seq_len=None path.
    out2 = jax.block_until_ready(autopool(x, 1.0, seq_len=None))
    ref2 = _autopool_ref(x, 1.0, seq_len=None)
    assert jnp.allclose(out2, ref2, atol=1e-5, rtol=1e-5), (out2, ref2)

    # Longer T with an explicit small time tile to exercise the online-softmax
    # (multi T-block) reduction path, including fully-masked trailing tiles.
    B2, C2, T2 = 3, 6, 300
    x2 = jax.random.normal(k3, (B2, C2, T2), dtype=jnp.float32)
    sl2 = [300, 200, 45]
    out3 = jax.block_until_ready(autopool(x2, 0.5, seq_len=sl2, time_tile=128))
    ref3 = _autopool_ref(x2, 0.5, seq_len=sl2)
    assert jnp.allclose(out3, ref3, atol=1e-5, rtol=1e-5), (out3, ref3)

    print("KERNEL_OK")
</pallas_src>

<mosaic_0001>
module attributes {stable_mosaic.version = 11 : i64} {
  func.func @_autopool_kernel(%arg0: i32, %arg1: i32, %arg2: memref<40x128xf32, #tpu.memory_space<vmem>>, %arg3: memref<40x1xf32, #tpu.memory_space<vmem>>, %arg4: memref<40x1xi32, #tpu.memory_space<vmem>>, %arg5: memref<40x1xf32, #tpu.memory_space<vmem>>, %arg6: memref<40x1xf32, #tpu.memory_space<vmem>>, %arg7: memref<40x1xf32, #tpu.memory_space<vmem>>, %arg8: memref<40x1xf32, #tpu.memory_space<vmem>>) attributes {dimension_semantics = [#tpu.dimension_semantics<parallel>, #tpu.dimension_semantics<arbitrary>], iteration_bounds = array<i64: 1, 1>, scalar_prefetch = 0 : i64, scratch_operands = 3 : i64, tpu.core_type = #tpu.core_type<tc>, window_params = [{transform_indices = @transform_0, window_bounds = array<i64: 40, 128>}, {transform_indices = @transform_1, window_bounds = array<i64: 40, 1>}, {transform_indices = @transform_2, window_bounds = array<i64: 40, 1>}, {transform_indices = @transform_3, window_bounds = array<i64: 40, 1>}]} {
    %c0_i32 = arith.constant 0 : i32
    %0 = arith.cmpi eq, %arg1, %c0_i32 : i32
    %1 = arith.extui %0 : i1 to i32
    %c0_i32_0 = arith.constant 0 : i32
    %2 = arith.cmpi ne, %1, %c0_i32_0 : i32
    scf.if %2 {
      %cst_23 = arith.constant 0xFF800000 : f32
      %42 = vector.broadcast %cst_23 : f32 to vector<40x1xf32>
      %c0_24 = arith.constant 0 : index
      %c0_25 = arith.constant 0 : index
      %43 = vector.load %arg6[%c0_24, %c0_25] : memref<40x1xf32, #tpu.memory_space<vmem>>, vector<40x1xf32>
      tpu.vector_store %arg6[%c0_24, %c0_25], %42 {strides = array<i32>} : memref<40x1xf32, #tpu.memory_space<vmem>>, vector<40x1xf32>,
      %cst_26 = arith.constant 0.000000e+00 : f32
      %44 = vector.broadcast %cst_26 : f32 to vector<40x1xf32>
      %c0_27 = arith.constant 0 : index
      %c0_28 = arith.constant 0 : index
      %45 = vector.load %arg7[%c0_27, %c0_28] : memref<40x1xf32, #tpu.memory_space<vmem>>, vector<40x1xf32>
      tpu.vector_store %arg7[%c0_27, %c0_28], %44 {strides = array<i32>} : memref<40x1xf32, #tpu.memory_space<vmem>>, vector<40x1xf32>,
      %cst_29 = arith.constant 0.000000e+00 : f32
      %46 = vector.broadcast %cst_29 : f32 to vector<40x1xf32>
      %c0_30 = arith.constant 0 : index
      %c0_31 = arith.constant 0 : index
      %47 = vector.load %arg8[%c0_30, %c0_31] : memref<40x1xf32, #tpu.memory_space<vmem>>, vector<40x1xf32>
      tpu.vector_store %arg8[%c0_30, %c0_31], %46 {strides = array<i32>} : memref<40x1xf32, #tpu.memory_space<vmem>>, vector<40x1xf32>,
    } else {
    }
    %c0 = arith.constant 0 : index
    %c0_1 = arith.constant 0 : index
    %3 = vector.load %arg2[%c0, %c0_1] : memref<40x128xf32, #tpu.memory_space<vmem>>, vector<40x128xf32>
    %c0_2 = arith.constant 0 : index
    %c0_3 = arith.constant 0 : index
    %4 = vector.load %arg3[%c0_2, %c0_3] : memref<40x1xf32, #tpu.memory_space<vmem>>, vector<40x1xf32>
    %c0_4 = arith.constant 0 : index
    %c0_5 = arith.constant 0 : index
    %5 = vector.load %arg4[%c0_4, %c0_5] : memref<40x1xi32, #tpu.memory_space<vmem>>, vector<40x1xi32>
    %6 = tpu.iota {dimensions = array<i32: 1>} : vector<40x128xi32>
    %c128_i32 = arith.constant 128 : i32
    %7 = arith.muli %arg1, %c128_i32 : i32
    %8 = vector.broadcast %7 : i32 to vector<40x128xi32>
    %9 = arith.addi %6, %8 : vector<40x128xi32>
    %10 = vector.broadcast %5 : vector<40x1xi32> to vector<40x128xi32>
    %11 = arith.cmpi slt, %9, %10 : vector<40x128xi32>
    %12 = vector.broadcast %4 : vector<40x1xf32> to vector<40x128xf32>
    %13 = arith.mulf %12, %3 : vector<40x128xf32>
    %cst = arith.constant 0xFF800000 : f32
    %14 = vector.broadcast %cst : f32 to vector<40x128xf32>
    %15 = arith.select %11, %13, %14 : vector<40x128xi1>, vector<40x128xf32>
    %c0_6 = arith.constant 0 : index
    %c0_7 = arith.constant 0 : index
    %16 = vector.load %arg6[%c0_6, %c0_7] : memref<40x1xf32, #tpu.memory_space<vmem>>, vector<40x1xf32>
    %cst_8 = arith.constant dense<0xFF800000> : vector<40xf32>
    %17 = vector.multi_reduction <maximumf>, %15, %cst_8 [1] : vector<40x128xf32> to vector<40xf32>
    %18 = vector.shape_cast %17 : vector<40xf32> to vector<40x1xf32>
    %19 = arith.maximumf %16, %18 : vector<40x1xf32>
    %20 = arith.subf %16, %19 : vector<40x1xf32>
    %21 = math.exp %20 : vector<40x1xf32>
    %22 = vector.broadcast %19 : vector<40x1xf32> to vector<40x128xf32>
    %23 = arith.subf %15, %22 : vector<40x128xf32>
    %24 = math.exp %23 : vector<40x128xf32>
    %c0_9 = arith.constant 0 : index
    %c0_10 = arith.constant 0 : index
    %25 = vector.load %arg8[%c0_9, %c0_10] : memref<40x1xf32, #tpu.memory_space<vmem>>, vector<40x1xf32>
    %26 = arith.mulf %21, %25 : vector<40x1xf32>
    %cst_11 = arith.constant dense<0.000000e+00> : vector<40xf32>
    %27 = vector.multi_reduction <add>, %24, %cst_11 [1] : vector<40x128xf32> to vector<40xf32>
    %28 = vector.shape_cast %27 : vector<40xf32> to vector<40x1xf32>
    %29 = arith.addf %26, %28 : vector<40x1xf32>
    %c0_12 = arith.constant 0 : index
    %c0_13 = arith.constant 0 : index
    %30 = vector.load %arg8[%c0_12, %c0_13] : memref<40x1xf32, #tpu.memory_space<vmem>>, vector<40x1xf32>
    tpu.vector_store %arg8[%c0_12, %c0_13], %29 {strides = array<i32>} : memref<40x1xf32, #tpu.memory_space<vmem>>, vector<40x1xf32>,
    %c0_14 = arith.constant 0 : index
    %c0_15 = arith.constant 0 : index
    %31 = vector.load %arg7[%c0_14, %c0_15] : memref<40x1xf32, #tpu.memory_space<vmem>>, vector<40x1xf32>
    %32 = arith.mulf %21, %31 : vector<40x1xf32>
    %33 = arith.mulf %24, %3 : vector<40x128xf32>
    %cst_16 = arith.constant dense<0.000000e+00> : vector<40xf32>
    %34 = vector.multi_reduction <add>, %33, %cst_16 [1] : vector<40x128xf32> to vector<40xf32>
    %35 = vector.shape_cast %34 : vector<40xf32> to vector<40x1xf32>
    %36 = arith.addf %32, %35 : vector<40x1xf32>
    %c0_17 = arith.constant 0 : index
    %c0_18 = arith.constant 0 : index
    %37 = vector.load %arg7[%c0_17, %c0_18] : memref<40x1xf32, #tpu.memory_space<vmem>>, vector<40x1xf32>
    tpu.vector_store %arg7[%c0_17, %c0_18], %36 {strides = array<i32>} : memref<40x1xf32, #tpu.memory_space<vmem>>, vector<40x1xf32>,
    %c0_19 = arith.constant 0 : index
    %c0_20 = arith.constant 0 : index
    %38 = vector.load %arg6[%c0_19, %c0_20] : memref<40x1xf32, #tpu.memory_space<vmem>>, vector<40x1xf32>
    tpu.vector_store %arg6[%c0_19, %c0_20], %19 {strides = array<i32>} : memref<40x1xf32, #tpu.memory_space<vmem>>, vector<40x1xf32>,
    %c0_i32_21 = arith.constant 0 : i32
    %39 = arith.cmpi eq, %arg1, %c0_i32_21 : i32
    %40 = arith.extui %39 : i1 to i32
    %c0_i32_22 = arith.constant 0 : i32
    %41 = arith.cmpi ne, %40, %c0_i32_22 : i32
    scf.if %41 {
      %c0_23 = arith.constant 0 : index
      %c0_24 = arith.constant 0 : index
      %42 = vector.load %arg7[%c0_23, %c0_24] : memref<40x1xf32, #tpu.memory_space<vmem>>, vector<40x1xf32>
      %c0_25 = arith.constant 0 : index
      %c0_26 = arith.constant 0 : index
      %43 = vector.load %arg8[%c0_25, %c0_26] : memref<40x1xf32, #tpu.memory_space<vmem>>, vector<40x1xf32>
      %44 = tpu.reciprocal %43 : vector<40x1xf32> -> vector<40x1xf32>
      %45 = arith.mulf %42, %44 : vector<40x1xf32>
      %c0_27 = arith.constant 0 : index
      %c0_28 = arith.constant 0 : index
      %46 = vector.load %arg5[%c0_27, %c0_28] : memref<40x1xf32, #tpu.memory_space<vmem>>, vector<40x1xf32>
      tpu.vector_store %arg5[%c0_27, %c0_28], %45 {strides = array<i32>} : memref<40x1xf32, #tpu.memory_space<vmem>>, vector<40x1xf32>,
    } else {
    }
    return
  }
  func.func @transform_0(%arg0: i32, %arg1: i32) -> (i32, i32) {
    %c0_i32 = arith.constant 0 : i32
    return %arg0, %arg1 : i32, i32
  }
  func.func @transform_1(%arg0: i32, %arg1: i32) -> (i32, i32) {
    %c0_i32 = arith.constant 0 : i32
    %c0_i32_0 = arith.constant 0 : i32
    return %arg0, %c0_i32 : i32, i32
  }
  func.func @transform_2(%arg0: i32, %arg1: i32) -> (i32, i32) {
    %c0_i32 = arith.constant 0 : i32
    %c0_i32_0 = arith.constant 0 : i32
    return %arg0, %c0_i32 : i32, i32
  }
  func.func @transform_3(%arg0: i32, %arg1: i32) -> (i32, i32) {
    %c0_i32 = arith.constant 0 : i32
    %c0_i32_0 = arith.constant 0 : i32
    return %arg0, %c0_i32 : i32, i32
  }
}

</mosaic_0001>

<llo_original>
// kernel: tpu_custom_call.1
$region0: #{tpu_custom_call.1}
  #allocation0 [shape = 'u32[]', space=smem, size = 0x4, offset = 0x4, fixed_abs, tag = 'smem constant byte address 0x4 - core index']
  #allocation1 [shape = 'u32[144,128]{1,0:T(1,128)}', space=vmem, size = 0x12000, scoped, tag = 'internal scratch']
  #allocation2 [shape = 'f32[40,1]{1,0:T(8,128)}', space=vmem, size = 0x5000, scoped, tag = 'scratch operand']
  #allocation3 [shape = 'f32[40,1]{1,0:T(8,128)}', space=vmem, size = 0x5000, scoped, tag = 'scratch operand']
  #allocation4 [shape = 'f32[40,1]{1,0:T(8,128)}', space=vmem, size = 0x5000, scoped, tag = 'scratch operand']
  %s0 = inlined_call_operand.vmem [shape: f32[40,128], index: 0, kind: input, shape index: {}]
  %s1 = inlined_call_operand.vmem [shape: f32[40,1], index: 1, kind: input, shape index: {}]
  %s2 = inlined_call_operand.vmem [shape: s32[40,1], index: 2, kind: input, shape index: {}]
  %s3 = inlined_call_operand.vmem [shape: f32[40,1], index: 3, kind: output, shape index: {}]
  %s4 = sld [smem:[#allocation0]]
  $region30: #{tpu_custom_call.1} parent=0
    _
  %s6 = ssub.s32 1, %s4
  %s7 = scalar_select 0, %s6, %s4
  // Predicated region
  $region2: #{tpu_custom_call.1} parent=0 // pred_check
    _
  $region3: #{tpu_custom_call.1} parent=0 // pred_check_branch
    %9 = sbr.rel (0) target = $region5
  $region4: #{tpu_custom_call.1} parent=0 // pred_region
    _
  $region5: #{tpu_custom_call.1} parent=0 // pred_fallthru
    _
  // Predicated region
  $region6: #{tpu_custom_call.1} parent=0 // pred_check
    _
  $region7: #{tpu_custom_call.1} parent=0 // pred_check_branch
    %11 = sbr.rel (0) target = $region9
  $region8: #{tpu_custom_call.1} parent=0 // pred_region
    _
  $region9: #{tpu_custom_call.1} parent=0 // pred_fallthru
    _
  // Predicated region
  $region10: #{tpu_custom_call.1} parent=0 // pred_check
    _
  $region11: #{tpu_custom_call.1} parent=0 // pred_check_branch
    %13 = sbr.rel (0) target = $region13
  $region12: #{tpu_custom_call.1} parent=0 // pred_region
    _
  $region13: #{tpu_custom_call.1} parent=0 // pred_fallthru
    _
  %p14 = scmp.eq.s32.totalorder 0, 0
  // Predicated region
  $region14: #{tpu_custom_call.1} parent=0 // pred_check
    %p15 = pneg %p14
  $region15: #{tpu_custom_call.1} parent=0 // pred_check_branch
    %17 = sbr.rel (%p15) target = $region17
  $region16: #{tpu_custom_call.1} parent=0 // pred_region
    %vm18 = vcmask 7168
    %19 = vst.msk [vmem:[#allocation2] sm:$0xff] %vm18, -inf
    %20 = vst.msk [vmem:[#allocation2 + $0x8] sm:$0xff] %vm18, -inf
    %21 = vst.msk [vmem:[#allocation2 + $0x10] sm:$0xff] %vm18, -inf
    %22 = vst.msk [vmem:[#allocation2 + $0x18] sm:$0xff] %vm18, -inf
    %23 = vst.msk [vmem:[#allocation2 + $0x20] sm:$0xff] %vm18, -inf
    %24 = vst.msk [vmem:[#allocation3] sm:$0xff] %vm18, 0.0
    %25 = vst.msk [vmem:[#allocation3 + $0x8] sm:$0xff] %vm18, 0.0
    %26 = vst.msk [vmem:[#allocation3 + $0x10] sm:$0xff] %vm18, 0.0
    %27 = vst.msk [vmem:[#allocation3 + $0x18] sm:$0xff] %vm18, 0.0
    %28 = vst.msk [vmem:[#allocation3 + $0x20] sm:$0xff] %vm18, 0.0
    %29 = vst.msk [vmem:[#allocation4] sm:$0xff] %vm18, 0.0
    %30 = vst.msk [vmem:[#allocation4 + $0x8] sm:$0xff] %vm18, 0.0
    %31 = vst.msk [vmem:[#allocation4 + $0x10] sm:$0xff] %vm18, 0.0
    %32 = vst.msk [vmem:[#allocation4 + $0x18] sm:$0xff] %vm18, 0.0
    %33 = vst.msk [vmem:[#allocation4 + $0x20] sm:$0xff] %vm18, 0.0
  $region17: #{tpu_custom_call.1} parent=0 // pred_fallthru
    _
  %v34 = vld [vmem:[%s0] sm:$0xff]
  %v35 = vld [vmem:[%s0 + $0x8] sm:$0xff]
  %v36 = vld [vmem:[%s0 + $0x10] sm:$0xff]
  %v37 = vld [vmem:[%s0 + $0x18] sm:$0xff]
  %v38 = vld [vmem:[%s0 + $0x20] sm:$0xff]
  %v39 = vld [vmem:[%s1] sm:$0xff]
  %v40 = vld [vmem:[%s1 + $0x8] sm:$0xff]
  %v41 = vld [vmem:[%s1 + $0x10] sm:$0xff]
  %v42 = vld [vmem:[%s1 + $0x18] sm:$0xff]
  %v43 = vld [vmem:[%s1 + $0x20] sm:$0xff]
  %v44 = vld [vmem:[%s2] sm:$0xff]
  %v45 = vld [vmem:[%s2 + $0x8] sm:$0xff]
  %v46 = vld [vmem:[%s2 + $0x10] sm:$0xff]
  %v47 = vld [vmem:[%s2 + $0x18] sm:$0xff]
  %v48 = vld [vmem:[%s2 + $0x20] sm:$0xff]
  %v49 = vlaneseq
  %v50 = vand.u32 %v49, 127
  %s51 = smul.u32 0, 128
  %v52 = vstv %s51
  %v53 = vadd.s32 %v50, %v52
  %54 = vset.pattern.permute.xlu0 0
  %55 = vperm.xlu0 %54, %v44
  %v56 = vpop.permute.xlu0 %55
  %57 = vset.pattern.permute.xlu0 0
  %58 = vperm.xlu0 %57, %v45
  %v59 = vpop.permute.xlu0 %58
  %60 = vset.pattern.permute.xlu0 0
  %61 = vperm.xlu0 %60, %v46
  %v62 = vpop.permute.xlu0 %61
  %63 = vset.pattern.permute.xlu0 0
  %64 = vperm.xlu0 %63, %v47
  %v65 = vpop.permute.xlu0 %64
  %66 = vset.pattern.permute.xlu0 0
  %67 = vperm.xlu0 %66, %v48
  %v68 = vpop.permute.xlu0 %67
  %vm69 = vcmp.lt.s32.totalorder %v53, %v56
  %vm70 = vcmp.lt.s32.totalorder %v53, %v59
  %vm71 = vcmp.lt.s32.totalorder %v53, %v62
  %vm72 = vcmp.lt.s32.totalorder %v53, %v65
  %vm73 = vcmp.lt.s32.totalorder %v53, %v68
  %75 = vset.pattern.permute.xlu0 0
  %76 = vperm.xlu0 %75, %v39
  %v77 = vpop.permute.xlu0 %76
  %80 = vset.pattern.permute.xlu0 0
  %81 = vperm.xlu0 %80, %v40
  %v82 = vpop.permute.xlu0 %81
  %85 = vset.pattern.permute.xlu0 0
  %86 = vperm.xlu0 %85, %v41
  %v87 = vpop.permute.xlu0 %86
  %90 = vset.pattern.permute.xlu0 0
  %91 = vperm.xlu0 %90, %v42
  %v92 = vpop.permute.xlu0 %91
  %95 = vset.pattern.permute.xlu0 0
  %96 = vperm.xlu0 %95, %v43
  %v97 = vpop.permute.xlu0 %96
  %v99 = vmul.f32 %v77, %v34
  %v100 = vmul.f32 %v82, %v35
  %v101 = vmul.f32 %v87, %v36
  %v102 = vmul.f32 %v92, %v37
  %v103 = vmul.f32 %v97, %v38
  %v104 = vsel %vm69, %v99, -inf
  %v105 = vsel %vm70, %v100, -inf
  %v106 = vsel %vm71, %v101, -inf
  %v107 = vsel %vm72, %v102, -inf
  %v108 = vsel %vm73, %v103, -inf
  %v109 = vld [vmem:[#allocation2] sm:$0xff]
  %v110 = vld [vmem:[#allocation2 + $0x8] sm:$0xff]
  %v111 = vld [vmem:[#allocation2 + $0x10] sm:$0xff]
  %v112 = vld [vmem:[#allocation2 + $0x18] sm:$0xff]
  %v113 = vld [vmem:[#allocation2 + $0x20] sm:$0xff]
  %114 = vmax.xlane.f32.xlu0 %v104
  %v115 = vpop.xlane.xlu0 %114
  %116 = vmax.xlane.f32.xlu0 %v105
  %v117 = vpop.xlane.xlu0 %116
  %118 = vmax.xlane.f32.xlu0 %v106
  %v119 = vpop.xlane.xlu0 %118
  %120 = vmax.xlane.f32.xlu0 %v107
  %v121 = vpop.xlane.xlu0 %120
  %122 = vmax.xlane.f32.xlu0 %v108
  %v123 = vpop.xlane.xlu0 %122
  %v124 = vmax.f32 %v109, %v115
  %v125 = vmax.f32 %v110, %v117
  %v126 = vmax.f32 %v111, %v119
  %v127 = vmax.f32 %v112, %v121
  %v128 = vmax.f32 %v113, %v123
  %v129 = vsub.f32 %v109, %v124
  %v130 = vsub.f32 %v110, %v125
  %v131 = vsub.f32 %v111, %v126
  %v132 = vsub.f32 %v112, %v127
  %v133 = vsub.f32 %v113, %v128
  %v134 = vmul.f32 %v129, 1.442695
  %v135 = vpow.pop %v134
  %v136 = vmul.f32 %v130, 1.442695
  %v137 = vpow.pop %v136
  %v138 = vmul.f32 %v131, 1.442695
  %v139 = vpow.pop %v138
  %v140 = vmul.f32 %v132, 1.442695
  %v141 = vpow.pop %v140
  %v142 = vmul.f32 %v133, 1.442695
  %v143 = vpow.pop %v142
  %145 = vset.pattern.permute.xlu0 0
  %146 = vperm.xlu0 %145, %v124
  %v147 = vpop.permute.xlu0 %146
  %150 = vset.pattern.permute.xlu0 0
  %151 = vperm.xlu0 %150, %v125
  %v152 = vpop.permute.xlu0 %151
  %155 = vset.pattern.permute.xlu0 0
  %156 = vperm.xlu0 %155, %v126
  %v157 = vpop.permute.xlu0 %156
  %160 = vset.pattern.permute.xlu0 0
  %161 = vperm.xlu0 %160, %v127
  %v162 = vpop.permute.xlu0 %161
  %165 = vset.pattern.permute.xlu0 0
  %166 = vperm.xlu0 %165, %v128
  %v167 = vpop.permute.xlu0 %166
  %v169 = vsub.f32 %v104, %v147
  %v170 = vsub.f32 %v105, %v152
  %v171 = vsub.f32 %v106, %v157
  %v172 = vsub.f32 %v107, %v162
  %v173 = vsub.f32 %v108, %v167
  %v174 = vmul.f32 %v169, 1.442695
  %v175 = vpow.pop %v174
  %v176 = vmul.f32 %v170, 1.442695
  %v177 = vpow.pop %v176
  %v178 = vmul.f32 %v171, 1.442695
  %v179 = vpow.pop %v178
  %v180 = vmul.f32 %v172, 1.442695
  %v181 = vpow.pop %v180
  %v182 = vmul.f32 %v173, 1.442695
  %v183 = vpow.pop %v182
  %v184 = vld [vmem:[#allocation4] sm:$0xff]
  %v185 = vld [vmem:[#allocation4 + $0x8] sm:$0xff]
  %v186 = vld [vmem:[#allocation4 + $0x10] sm:$0xff]
  %v187 = vld [vmem:[#allocation4 + $0x18] sm:$0xff]
  %v188 = vld [vmem:[#allocation4 + $0x20] sm:$0xff]
  %v189 = vmul.f32 %v135, %v184
  %v190 = vmul.f32 %v137, %v185
  %v191 = vmul.f32 %v139, %v186
  %v192 = vmul.f32 %v141, %v187
  %v193 = vmul.f32 %v143, %v188
  %194 = vadd.xlane.f32.xlu0 %v175
  %v195 = vpop.xlane.xlu0 %194
  %196 = vadd.xlane.f32.xlu0 %v177
  %v197 = vpop.xlane.xlu0 %196
  %198 = vadd.xlane.f32.xlu0 %v179
  %v199 = vpop.xlane.xlu0 %198
  %200 = vadd.xlane.f32.xlu0 %v181
  %v201 = vpop.xlane.xlu0 %200
  %202 = vadd.xlane.f32.xlu0 %v183
  %v203 = vpop.xlane.xlu0 %202
  %v204 = vadd.f32 %v189, %v195
  %v205 = vadd.f32 %v190, %v197
  %v206 = vadd.f32 %v191, %v199
  %v207 = vadd.f32 %v192, %v201
  %v208 = vadd.f32 %v193, %v203
  %vm209 = vcmask 7168
  %210 = vst.msk [vmem:[#allocation4] sm:$0xff] %vm209, %v204
  %211 = vst.msk [vmem:[#allocation4 + $0x8] sm:$0xff] %vm209, %v205
  %212 = vst.msk [vmem:[#allocation4 + $0x10] sm:$0xff] %vm209, %v206
  %213 = vst.msk [vmem:[#allocation4 + $0x18] sm:$0xff] %vm209, %v207
  %214 = vst.msk [vmem:[#allocation4 + $0x20] sm:$0xff] %vm209, %v208
  %v215 = vld [vmem:[#allocation3] sm:$0xff]
  %v216 = vld [vmem:[#allocation3 + $0x8] sm:$0xff]
  %v217 = vld [vmem:[#allocation3 + $0x10] sm:$0xff]
  %v218 = vld [vmem:[#allocation3 + $0x18] sm:$0xff]
  %v219 = vld [vmem:[#allocation3 + $0x20] sm:$0xff]
  %v220 = vmul.f32 %v135, %v215
  %v221 = vmul.f32 %v137, %v216
  %v222 = vmul.f32 %v139, %v217
  %v223 = vmul.f32 %v141, %v218
  %v224 = vmul.f32 %v143, %v219
  %v225 = vmul.f32 %v175, %v34
  %v226 = vmul.f32 %v177, %v35
  %v227 = vmul.f32 %v179, %v36
  %v228 = vmul.f32 %v181, %v37
  %v229 = vmul.f32 %v183, %v38
  %230 = vadd.xlane.f32.xlu0 %v225
  %v231 = vpop.xlane.xlu0 %230
  %232 = vadd.xlane.f32.xlu0 %v226
  %v233 = vpop.xlane.xlu0 %232
  %234 = vadd.xlane.f32.xlu0 %v227
  %v235 = vpop.xlane.xlu0 %234
  %236 = vadd.xlane.f32.xlu0 %v228
  %v237 = vpop.xlane.xlu0 %236
  %238 = vadd.xlane.f32.xlu0 %v229
  %v239 = vpop.xlane.xlu0 %238
  %v240 = vadd.f32 %v220, %v231
  %v241 = vadd.f32 %v221, %v233
  %v242 = vadd.f32 %v222, %v235
  %v243 = vadd.f32 %v223, %v237
  %v244 = vadd.f32 %v224, %v239
  %245 = vst.msk [vmem:[#allocation3] sm:$0xff] %vm209, %v240
  %246 = vst.msk [vmem:[#allocation3 + $0x8] sm:$0xff] %vm209, %v241
  %247 = vst.msk [vmem:[#allocation3 + $0x10] sm:$0xff] %vm209, %v242
  %248 = vst.msk [vmem:[#allocation3 + $0x18] sm:$0xff] %vm209, %v243
  %249 = vst.msk [vmem:[#allocation3 + $0x20] sm:$0xff] %vm209, %v244
  %250 = vst.msk [vmem:[#allocation2] sm:$0xff] %vm209, %v124
  %251 = vst.msk [vmem:[#allocation2 + $0x8] sm:$0xff] %vm209, %v125
  %252 = vst.msk [vmem:[#allocation2 + $0x10] sm:$0xff] %vm209, %v126
  %253 = vst.msk [vmem:[#allocation2 + $0x18] sm:$0xff] %vm209, %v127
  %254 = vst.msk [vmem:[#allocation2 + $0x20] sm:$0xff] %vm209, %v128
  // Predicated region
  $region18: #{tpu_custom_call.1} parent=0 // pred_check
    %p255 = pneg %p14
  $region19: #{tpu_custom_call.1} parent=0 // pred_check_branch
    %257 = sbr.rel (%p255) target = $region21
  $region20: #{tpu_custom_call.1} parent=0 // pred_region
    %v258 = vld [vmem:[#allocation3] sm:$0xff]
    %v259 = vld [vmem:[#allocation3 + $0x8] sm:$0xff]
    %v260 = vld [vmem:[#allocation3 + $0x10] sm:$0xff]
    %v261 = vld [vmem:[#allocation3 + $0x18] sm:$0xff]
    %v262 = vld [vmem:[#allocation3 + $0x20] sm:$0xff]
    %v263 = vld [vmem:[#allocation4] sm:$0xff]
    %v264 = vld [vmem:[#allocation4 + $0x8] sm:$0xff]
    %v265 = vld [vmem:[#allocation4 + $0x10] sm:$0xff]
    %v266 = vld [vmem:[#allocation4 + $0x18] sm:$0xff]
    %v267 = vld [vmem:[#allocation4 + $0x20] sm:$0xff]
    %v268 = vrcp.pop %v263
    %v269 = vrcp.pop %v264
    %v270 = vrcp.pop %v265
    %v271 = vrcp.pop %v266
    %v272 = vrcp.pop %v267
    %v273 = vmul.f32 %v258, %v268
    %v274 = vmul.f32 %v259, %v269
    %v275 = vmul.f32 %v260, %v270
    %v276 = vmul.f32 %v261, %v271
    %v277 = vmul.f32 %v262, %v272
    %278 = vst.msk [vmem:[%s3] sm:$0xff] %vm209, %v273
    %279 = vst.msk [vmem:[%s3 + $0x8] sm:$0xff] %vm209, %v274
    %280 = vst.msk [vmem:[%s3 + $0x10] sm:$0xff] %vm209, %v275
    %281 = vst.msk [vmem:[%s3 + $0x18] sm:$0xff] %vm209, %v276
    %282 = vst.msk [vmem:[%s3 + $0x20] sm:$0xff] %vm209, %v277
  $region21: #{tpu_custom_call.1} parent=0 // pred_fallthru
    _
  // Predicated region
  $region22: #{tpu_custom_call.1} parent=0 // pred_check
    _
  $region23: #{tpu_custom_call.1} parent=0 // pred_check_branch
    %284 = sbr.rel (0) target = $region25
  $region24: #{tpu_custom_call.1} parent=0 // pred_region
    _
  $region25: #{tpu_custom_call.1} parent=0 // pred_fallthru
    _
  // Predicated region
  $region26: #{tpu_custom_call.1} parent=0 // pred_check
    _
  $region27: #{tpu_custom_call.1} parent=0 // pred_check_branch
    %286 = sbr.rel (0) target = $region29
  $region28: #{tpu_custom_call.1} parent=0 // pred_region
    _
  $region29: #{tpu_custom_call.1} parent=0 // pred_fallthru
    _

</llo_original>
